<compile_context>
chip_gen: v7x
topology: tpu7x:2x2x1
jax: 0.10.0
libtpu: 0.0.40
codegen_flags: <defaults>
</compile_context>

<pallas_src>
import math

import jax
import jax.numpy as jnp
from jax.experimental import pallas as pl
from jax.experimental.pallas import tpu as pltpu


def _round_up(x, m):
    return ((x + m - 1) // m) * m


def _make_linear_kernel(k_total, tk, mask_k_tail):
    """K-accumulating matmul kernel with optional in-kernel K-tail masking."""

    def kernel(x_ref, w_ref, b_ref, o_ref, acc_ref):
        # x_ref: (tm, tk)  w_ref: (tk, tn)  b_ref: (1, tn)  o_ref: (tm, tn)
        # acc_ref: f32 (tm, tn) VMEM scratch, resident across the K grid axis.
        k = pl.program_id(2)

        @pl.when(k == 0)
        def _init():
            acc_ref[...] = jnp.zeros_like(acc_ref)

        x_tile = x_ref[...]
        w_tile = w_ref[...]
        if mask_k_tail:
            # K does not divide tk: zero the out-of-range K slice of *both*
            # operands (0 * 0 == 0, so stale tail-block VMEM contents — even
            # NaN/inf — cannot leak into the reduction). VPU select, cheap vs
            # the MXU work at these tile sizes.
            base = k * tk
            col = jax.lax.broadcasted_iota(jnp.int32, x_tile.shape, 1)
            x_tile = jnp.where(base + col < k_total, x_tile,
                               jnp.zeros_like(x_tile))
            row = jax.lax.broadcasted_iota(jnp.int32, w_tile.shape, 0)
            w_tile = jnp.where(base + row < k_total, w_tile,
                               jnp.zeros_like(w_tile))

        acc_ref[...] += jnp.dot(x_tile, w_tile,
                                preferred_element_type=jnp.float32)

        @pl.when(k == pl.num_programs(2) - 1)
        def _finalize():
            # Bias added exactly once per output tile, in f32, in the epilogue.
            o_ref[...] = (acc_ref[...]
                          + b_ref[...].astype(jnp.float32)).astype(o_ref.dtype)

    return kernel


def pallas_linear(x, w, b, *, tm=512, tn=1024, tk=1024, compute_dtype="auto"):
    """y = x @ w + b as a tiled, K-accumulating Pallas TPU matmul.

    x: (M, in_)   w: (in_, out_)   b: (out_,)   ->   (M, out_) in x.dtype.

    compute_dtype:
      "auto" (default): stream x/w in bf16 for large f32 layers (MXU-native,
        halves HBM traffic), keep f32 for small problems so the demo stays
        bit-tight. Accumulation is always f32.
      None: stream in the input dtype.   dtype: force that streaming dtype.
    """
    M, K = x.shape
    Kw, N = w.shape
    assert K == Kw, "x / w inner dimensions must match"
    assert b.shape == (N,), "bias must be (out_,)"
    out_dtype = x.dtype

    # --- bf16 fast path (default for large layers) -------------------------
    if compute_dtype == "auto":
        big = (K * N >= (1 << 20)) or (M * K >= (1 << 20))
        compute_dtype = jnp.bfloat16 if (big and x.dtype == jnp.float32) else None
    if compute_dtype is not None:
        x = x.astype(compute_dtype)
        w = w.astype(compute_dtype)

    in_bytes = jnp.dtype(x.dtype).itemsize
    out_bytes = jnp.dtype(out_dtype).itemsize
    sub = max(8, 32 // max(in_bytes, 1))  # sublane multiple: 8 f32 / 16 bf16 / 32 int8

    # --- tile selection -----------------------------------------------------
    # Cap tiles at the layout-rounded problem size (small-M fast path: x and
    # the accumulator stay resident, weights stream exactly once), then keep
    # them hardware friendly: sublane multiple on M, lane-dense (128) on K/N.
    tm = _round_up(min(tm, _round_up(M, sub)), sub)
    tk = _round_up(min(tk, _round_up(K, 128)), 128)
    tn = _round_up(min(tn, _round_up(N, 128)), 128)

    # v7x megacore: make sure there are >= 2 independent (i, j) blocks when
    # possible, so the second TensorCore is not idle (harmless on v5e/v6e).
    if pl.cdiv(M, tm) * pl.cdiv(N, tn) < 2 and tn > 128:
        tn = max(128, _round_up(pl.cdiv(tn, 2), 128))

    grid = (pl.cdiv(M, tm), pl.cdiv(N, tn), pl.cdiv(K, tk))
    gm, gn, gk = grid
    mask_k_tail = (K % tk) != 0

    # Bias kept in f32 for the epilogue; (1, tn) blocks (lane-dense).
    b2 = b.reshape(1, N).astype(jnp.float32)

    # Scheduler hint: x is re-read gn times, w re-read gm times.
    cost = pl.CostEstimate(
        flops=2 * M * K * N,
        transcendentals=0,
        bytes_accessed=(gn * M * K + gm * K * N) * in_bytes
        + M * N * out_bytes + N * 4,
    )

    # Scoped-VMEM budget: double-buffered x/w/out tiles + f32 accumulator.
    vmem_bytes = (2 * (tm * tk + tk * tn) * in_bytes
                  + 2 * tm * tn * out_bytes
                  + tm * tn * 4
                  + 2 * tn * 4)
    vmem_limit = int(min(max(vmem_bytes + (8 << 20), 32 << 20), 64 << 20))

    out = pl.pallas_call(
        _make_linear_kernel(K, tk, mask_k_tail),
        out_shape=jax.ShapeDtypeStruct((M, N), out_dtype),
        grid_spec=pltpu.PrefetchScalarGridSpec(
            num_scalar_prefetch=0,
            grid=grid,
            in_specs=[
                pl.BlockSpec((tm, tk), lambda i, j, k: (i, k)),   # x tile
                pl.BlockSpec((tk, tn), lambda i, j, k: (k, j)),   # w tile
                pl.BlockSpec((1, tn), lambda i, j, k: (0, j)),    # bias tile
            ],
            out_specs=pl.BlockSpec((tm, tn), lambda i, j, k: (i, j)),
            scratch_shapes=[pltpu.VMEM((tm, tn), jnp.float32)],
        ),
        compiler_params=pltpu.CompilerParams(
            # M and N axes independent (megacore-shardable); K is the reduction.
            dimension_semantics=("parallel", "parallel", "arbitrary"),
            vmem_limit_bytes=vmem_limit,
        ),
        cost_estimate=cost,
    )(x, w, b2)

    return out


if __name__ == "__main__":
    # Module config (synthetic, small): in_=32, out_=64, k=8 (k unused in fwd)
    in_, out_, k = 32, 64, 8
    M = 16  # batch

    key = jax.random.PRNGKey(0)
    kx, kw, kb = jax.random.split(key, 3)

    # Deterministic init matching reset_parameters(): uniform(-stdv, stdv),
    # stdv = 1 / sqrt(out_)
    stdv = 1.0 / math.sqrt(out_)
    w = jax.random.uniform(kw, (in_, out_), jnp.float32, minval=-stdv, maxval=stdv)
    b = jax.random.uniform(kb, (out_,), jnp.float32, minval=-stdv, maxval=stdv)
    x = jax.random.normal(kx, (M, in_), jnp.float32)

    y = pallas_linear(x, w, b)
    jax.block_until_ready(y)

    # Correctness check against plain JAX reference. (The "auto" path keeps
    # f32 streaming for this tiny layer, so a tight tolerance is valid; the
    # bf16 fast path only kicks in for large layers.)
    y_ref = x @ w + b
    assert y.shape == (M, out_)
    assert jnp.allclose(y, y_ref, atol=1e-5, rtol=1e-5)

    print("KERNEL_OK")
</pallas_src>

<mosaic_0001>
module attributes {stable_mosaic.version = 11 : i64} {
  func.func @kernel(%arg0: i32, %arg1: i32, %arg2: i32, %arg3: memref<16x128xf32, #tpu.memory_space<vmem>>, %arg4: memref<128x128xf32, #tpu.memory_space<vmem>>, %arg5: memref<1x128xf32, #tpu.memory_space<vmem>>, %arg6: memref<16x128xf32, #tpu.memory_space<vmem>>, %arg7: memref<16x128xf32, #tpu.memory_space<vmem>>) attributes {dimension_semantics = [#tpu.dimension_semantics<parallel>, #tpu.dimension_semantics<parallel>, #tpu.dimension_semantics<arbitrary>], iteration_bounds = array<i64: 1, 1, 1>, scalar_prefetch = 0 : i64, scratch_operands = 1 : i64, tpu.core_type = #tpu.core_type<tc>, window_params = [{transform_indices = @transform_0, window_bounds = array<i64: 16, 128>}, {transform_indices = @transform_1, window_bounds = array<i64: 128, 128>}, {transform_indices = @transform_2, window_bounds = array<i64: 1, 128>}, {transform_indices = @transform_3, window_bounds = array<i64: 16, 128>}]} {
    %c0_i32 = arith.constant 0 : i32
    %0 = arith.cmpi eq, %arg2, %c0_i32 : i32
    %1 = arith.extui %0 : i1 to i32
    %c0_i32_0 = arith.constant 0 : i32
    %2 = arith.cmpi ne, %1, %c0_i32_0 : i32
    scf.if %2 {
      %cst_13 = arith.constant 0.000000e+00 : f32
      %27 = vector.broadcast %cst_13 : f32 to vector<16x128xf32>
      %c0_14 = arith.constant 0 : index
      %c0_15 = arith.constant 0 : index
      %28 = vector.load %arg7[%c0_14, %c0_15] : memref<16x128xf32, #tpu.memory_space<vmem>>, vector<16x128xf32>
      tpu.vector_store %arg7[%c0_14, %c0_15], %27 {strides = array<i32>} : memref<16x128xf32, #tpu.memory_space<vmem>>, vector<16x128xf32>,
    } else {
    }
    %c0 = arith.constant 0 : index
    %c0_1 = arith.constant 0 : index
    %3 = vector.load %arg3[%c0, %c0_1] : memref<16x128xf32, #tpu.memory_space<vmem>>, vector<16x128xf32>
    %c0_2 = arith.constant 0 : index
    %c0_3 = arith.constant 0 : index
    %4 = vector.load %arg4[%c0_2, %c0_3] : memref<128x128xf32, #tpu.memory_space<vmem>>, vector<128x128xf32>
    %c128_i32 = arith.constant 128 : i32
    %5 = arith.muli %arg2, %c128_i32 : i32
    %6 = tpu.iota {dimensions = array<i32: 1>} : vector<16x128xi32>
    %7 = vector.broadcast %5 : i32 to vector<16x128xi32>
    %8 = arith.addi %7, %6 : vector<16x128xi32>
    %c32_i32 = arith.constant 32 : i32
    %9 = vector.broadcast %c32_i32 : i32 to vector<16x128xi32>
    %10 = arith.cmpi slt, %8, %9 : vector<16x128xi32>
    %cst = arith.constant 0.000000e+00 : f32
    %11 = vector.broadcast %cst : f32 to vector<16x128xf32>
    %12 = arith.select %10, %3, %11 : vector<16x128xi1>, vector<16x128xf32>
    %13 = tpu.iota {dimensions = array<i32: 0>} : vector<128x128xi32>
    %14 = vector.broadcast %5 : i32 to vector<128x128xi32>
    %15 = arith.addi %14, %13 : vector<128x128xi32>
    %c32_i32_4 = arith.constant 32 : i32
    %16 = vector.broadcast %c32_i32_4 : i32 to vector<128x128xi32>
    %17 = arith.cmpi slt, %15, %16 : vector<128x128xi32>
    %cst_5 = arith.constant 0.000000e+00 : f32
    %18 = vector.broadcast %cst_5 : f32 to vector<128x128xf32>
    %19 = arith.select %17, %4, %18 : vector<128x128xi1>, vector<128x128xf32>
    %c0_6 = arith.constant 0 : index
    %c0_7 = arith.constant 0 : index
    %20 = vector.load %arg7[%c0_6, %c0_7] : memref<16x128xf32, #tpu.memory_space<vmem>>, vector<16x128xf32>
    %cst_8 = arith.constant dense<0.000000e+00> : vector<16x128xf32>
    %21 = tpu.matmul %12, %19, %cst_8 {dimension_numbers = #tpu.dot_dimension_numbers<[1], [0], [0], [1], [0, 0, 1, 1], [], []>} : vector<16x128xf32>, vector<128x128xf32>, vector<16x128xf32> -> vector<16x128xf32>
    %22 = arith.addf %20, %21 : vector<16x128xf32>
    %c0_9 = arith.constant 0 : index
    %c0_10 = arith.constant 0 : index
    %23 = vector.load %arg7[%c0_9, %c0_10] : memref<16x128xf32, #tpu.memory_space<vmem>>, vector<16x128xf32>
    tpu.vector_store %arg7[%c0_9, %c0_10], %22 {strides = array<i32>} : memref<16x128xf32, #tpu.memory_space<vmem>>, vector<16x128xf32>,
    %c0_i32_11 = arith.constant 0 : i32
    %24 = arith.cmpi eq, %arg2, %c0_i32_11 : i32
    %25 = arith.extui %24 : i1 to i32
    %c0_i32_12 = arith.constant 0 : i32
    %26 = arith.cmpi ne, %25, %c0_i32_12 : i32
    scf.if %26 {
      %c0_13 = arith.constant 0 : index
      %c0_14 = arith.constant 0 : index
      %27 = vector.load %arg7[%c0_13, %c0_14] : memref<16x128xf32, #tpu.memory_space<vmem>>, vector<16x128xf32>
      %c0_15 = arith.constant 0 : index
      %c0_16 = arith.constant 0 : index
      %28 = vector.load %arg5[%c0_15, %c0_16] : memref<1x128xf32, #tpu.memory_space<vmem>>, vector<1x128xf32>
      %29 = vector.broadcast %28 : vector<1x128xf32> to vector<16x128xf32>
      %30 = arith.addf %27, %29 : vector<16x128xf32>
      %c0_17 = arith.constant 0 : index
      %c0_18 = arith.constant 0 : index
      %31 = vector.load %arg6[%c0_17, %c0_18] : memref<16x128xf32, #tpu.memory_space<vmem>>, vector<16x128xf32>
      tpu.vector_store %arg6[%c0_17, %c0_18], %30 {strides = array<i32>} : memref<16x128xf32, #tpu.memory_space<vmem>>, vector<16x128xf32>,
    } else {
    }
    return
  }
  func.func @transform_0(%arg0: i32, %arg1: i32, %arg2: i32) -> (i32, i32) {
    %c0_i32 = arith.constant 0 : i32
    return %arg0, %arg2 : i32, i32
  }
  func.func @transform_1(%arg0: i32, %arg1: i32, %arg2: i32) -> (i32, i32) {
    %c0_i32 = arith.constant 0 : i32
    return %arg2, %arg1 : i32, i32
  }
  func.func @transform_2(%arg0: i32, %arg1: i32, %arg2: i32) -> (i32, i32) {
    %c0_i32 = arith.constant 0 : i32
    %c0_i32_0 = arith.constant 0 : i32
    return %c0_i32, %arg1 : i32, i32
  }
  func.func @transform_3(%arg0: i32, %arg1: i32, %arg2: i32) -> (i32, i32) {
    %c0_i32 = arith.constant 0 : i32
    return %arg0, %arg1 : i32, i32
  }
}

</mosaic_0001>

<llo_original>
// kernel: tpu_custom_call.1
$region0: #{tpu_custom_call.1}
  #allocation0 [shape = 'u32[]', space=smem, size = 0x4, offset = 0x4, fixed_abs, tag = 'smem constant byte address 0x4 - core index']
  #allocation1 [shape = 'u32[144,128]{1,0:T(1,128)}', space=vmem, size = 0x12000, scoped, tag = 'internal scratch']
  #allocation2 [shape = 'f32[16,128]{1,0:T(8,128)}', space=vmem, size = 0x2000, scoped, tag = 'scratch operand']
  %s0 = inlined_call_operand.hbm [shape: f32[16,32], index: 0, kind: input, shape index: {}]
  %s1 = inlined_call_operand.hbm [shape: f32[32,64], index: 1, kind: input, shape index: {}]
  %s2 = inlined_call_operand.vmem [shape: f32[1,64], index: 2, kind: input, shape index: {}]
  %s3 = inlined_call_operand.hbm [shape: f32[16,64], index: 3, kind: output, shape index: {}]
  %s4 = sld [smem:[#allocation0]]
  $region38: #{tpu_custom_call.1} parent=0
    _
  %s6 = ssub.s32 1, %s4
  %s7 = scalar_select 0, %s6, %s4
  $region1: #{tpu_custom_call.1} parent=0
    #allocation3 [shape = 'u8[8192]{0}', space=vmem, size = 0x2000, scoped, tag = 'input window, operand 0, single buffered']
    #allocation4 [shape = 's32[1]{0}', space=sflag, size = 0x4, scoped, tag = 'scoped memory for tpu_custom_call.1']
    #allocation5 [shape = 's32[1]{0}', space=sflag, size = 0x4, scoped, tag = 'scoped memory for tpu_custom_call.1']
    #allocation6 [shape = 'u8[65536]{0}', space=vmem, size = 0x10000, scoped, tag = 'input window, operand 1, single buffered']
    #allocation7 [shape = 's32[1]{0}', space=sflag, size = 0x4, scoped, tag = 'scoped memory for tpu_custom_call.1']
    #allocation8 [shape = 'u8[8192]{0}', space=vmem, size = 0x2000, scoped, tag = 'output window, operand 0, single buffered']
    %8 = vsyncpa [#allocation4], 0
    %9 = vsyncpa [#allocation7], 0
    %10 = vsyncpa [#allocation5], 0
    // Predicated region
    $region2: #{tpu_custom_call.1} parent=1 // pred_check
      _
    $region3: #{tpu_custom_call.1} parent=1 // pred_check_branch
      %12 = sbr.rel (0) target = $region5
    $region4: #{tpu_custom_call.1} parent=1 // pred_region
      %s14 = ssub.s32 256, 256
      %15 = vsyncadd [#allocation4], %s14
      %s16 = sshll.u32 [#allocation3], 4
      %s17 = int_to_ptr.vmem [resolvable:$true] %s16
      %22 = dma.hbm_to_vmem [thread:$0]  %s0, 256, %s17, [#allocation4], 128, 128, 8
    $region5: #{tpu_custom_call.1} parent=1 // pred_fallthru
      _
    // Predicated region
    $region6: #{tpu_custom_call.1} parent=1 // pred_check
      _
    $region7: #{tpu_custom_call.1} parent=1 // pred_check_branch
      %24 = sbr.rel (0) target = $region9
    $region8: #{tpu_custom_call.1} parent=1 // pred_region
      %s26 = ssub.s32 2048, 512
      %27 = vsyncadd [#allocation7], %s26
      %s28 = sshll.u32 [#allocation6], 4
      %s29 = int_to_ptr.vmem [resolvable:$true] %s28
      %34 = dma.hbm_to_vmem [thread:$0]  %s1, 512, %s29, [#allocation7], 128, 128, 8
    $region9: #{tpu_custom_call.1} parent=1 // pred_fallthru
      _
    // Predicated region
    $region10: #{tpu_custom_call.1} parent=1 // pred_check
      _
    $region11: #{tpu_custom_call.1} parent=1 // pred_check_branch
      %36 = sbr.rel (0) target = $region13
    $region12: #{tpu_custom_call.1} parent=1 // pred_region
      _
    $region13: #{tpu_custom_call.1} parent=1 // pred_fallthru
      _
    // Predicated region
    $region14: #{tpu_custom_call.1} parent=1 // pred_check
      _
    $region15: #{tpu_custom_call.1} parent=1 // pred_check_branch
      %38 = sbr.rel (0) target = $region17
    $region16: #{tpu_custom_call.1} parent=1 // pred_region
      %39 = dma.done [#allocation4], 256
    $region17: #{tpu_custom_call.1} parent=1 // pred_fallthru
      _
    // Predicated region
    $region18: #{tpu_custom_call.1} parent=1 // pred_check
      _
    $region19: #{tpu_custom_call.1} parent=1 // pred_check_branch
      %41 = sbr.rel (0) target = $region21
    $region20: #{tpu_custom_call.1} parent=1 // pred_region
      %42 = dma.done [#allocation7], 2048
    $region21: #{tpu_custom_call.1} parent=1 // pred_fallthru
      _
    %p43 = scmp.eq.s32.totalorder 0, 0
    // Predicated region
    $region22: #{tpu_custom_call.1} parent=1 // pred_check
      %p44 = pneg %p43
    $region23: #{tpu_custom_call.1} parent=1 // pred_check_branch
      %46 = sbr.rel (%p44) target = $region25
    $region24: #{tpu_custom_call.1} parent=1 // pred_region
      %47 = vst [vmem:[#allocation2] sm:$0xff] 0.0
      %48 = vst [vmem:[#allocation2 + $0x8] sm:$0xff] 0.0
    $region25: #{tpu_custom_call.1} parent=1 // pred_fallthru
      _
    %v49 = vld [vmem:[#allocation3] sm:$0xff]
    %v50 = vld [vmem:[#allocation3 + $0x8] sm:$0xff]
    %v51 = vld [vmem:[#allocation6] sm:$0xff]
    %v52 = vld [vmem:[#allocation6 + $0x8] sm:$0xff]
    %v53 = vld [vmem:[#allocation6 + $0x10] sm:$0xff]
    %v54 = vld [vmem:[#allocation6 + $0x18] sm:$0xff]
    %v55 = vld [vmem:[#allocation6 + $0x20] sm:$0xff]
    %v56 = vld [vmem:[#allocation6 + $0x28] sm:$0xff]
    %v57 = vld [vmem:[#allocation6 + $0x30] sm:$0xff]
    %v58 = vld [vmem:[#allocation6 + $0x38] sm:$0xff]
    %v59 = vld [vmem:[#allocation6 + $0x40] sm:$0xff]
    %v60 = vld [vmem:[#allocation6 + $0x48] sm:$0xff]
    %v61 = vld [vmem:[#allocation6 + $0x50] sm:$0xff]
    %v62 = vld [vmem:[#allocation6 + $0x58] sm:$0xff]
    %v63 = vld [vmem:[#allocation6 + $0x60] sm:$0xff]
    %v64 = vld [vmem:[#allocation6 + $0x68] sm:$0xff]
    %v65 = vld [vmem:[#allocation6 + $0x70] sm:$0xff]
    %v66 = vld [vmem:[#allocation6 + $0x78] sm:$0xff]
    %s67 = smul.u32 0, 128
    %v68 = vlaneseq
    %v69 = vand.u32 %v68, 127
    %v70 = vstv %s67
    %v71 = vadd.s32 %v70, %v69
    %vm72 = vcmp.lt.s32.totalorder %v71, 32
    %v73 = vsel %vm72, %v49, 0.0
    %v74 = vsel %vm72, %v50, 0.0
    %v75 = vlaneseq
    %v76 = vshrl.u32 %v75, 7
    %v77 = vadd.s32 %v76, 8
    %v78 = vadd.s32 %v76, 16
    %v79 = vadd.s32 %v76, 24
    %v80 = vadd.s32 %v76, 32
    %v81 = vadd.s32 %v76, 40
    %v82 = vadd.s32 %v76, 48
    %v83 = vadd.s32 %v76, 56
    %v84 = vadd.s32 %v76, 64
    %v85 = vadd.s32 %v76, 72
    %v86 = vadd.s32 %v76, 80
    %v87 = vadd.s32 %v76, 88
    %v88 = vadd.s32 %v76, 96
    %v89 = vadd.s32 %v76, 104
    %v90 = vadd.s32 %v76, 112
    %v91 = vadd.s32 %v76, 120
    %v92 = vadd.s32 %v70, %v76
    %v93 = vadd.s32 %v70, %v77
    %v94 = vadd.s32 %v70, %v78
    %v95 = vadd.s32 %v70, %v79
    %v96 = vadd.s32 %v70, %v80
    %v97 = vadd.s32 %v70, %v81
    %v98 = vadd.s32 %v70, %v82
    %v99 = vadd.s32 %v70, %v83
    %v100 = vadd.s32 %v70, %v84
    %v101 = vadd.s32 %v70, %v85
    %v102 = vadd.s32 %v70, %v86
    %v103 = vadd.s32 %v70, %v87
    %v104 = vadd.s32 %v70, %v88
    %v105 = vadd.s32 %v70, %v89
    %v106 = vadd.s32 %v70, %v90
    %v107 = vadd.s32 %v70, %v91
    %vm108 = vcmp.lt.s32.totalorder %v92, 32
    %vm109 = vcmp.lt.s32.totalorder %v93, 32
    %vm110 = vcmp.lt.s32.totalorder %v94, 32
    %vm111 = vcmp.lt.s32.totalorder %v95, 32
    %vm112 = vcmp.lt.s32.totalorder %v96, 32
    %vm113 = vcmp.lt.s32.totalorder %v97, 32
    %vm114 = vcmp.lt.s32.totalorder %v98, 32
    %vm115 = vcmp.lt.s32.totalorder %v99, 32
    %vm116 = vcmp.lt.s32.totalorder %v100, 32
    %vm117 = vcmp.lt.s32.totalorder %v101, 32
    %vm118 = vcmp.lt.s32.totalorder %v102, 32
    %vm119 = vcmp.lt.s32.totalorder %v103, 32
    %vm120 = vcmp.lt.s32.totalorder %v104, 32
    %vm121 = vcmp.lt.s32.totalorder %v105, 32
    %vm122 = vcmp.lt.s32.totalorder %v106, 32
    %vm123 = vcmp.lt.s32.totalorder %v107, 32
    %v124 = vsel %vm108, %v51, 0.0
    %v125 = vsel %vm109, %v52, 0.0
    %v126 = vsel %vm110, %v53, 0.0
    %v127 = vsel %vm111, %v54, 0.0
    %v128 = vsel %vm112, %v55, 0.0
    %v129 = vsel %vm113, %v56, 0.0
    %v130 = vsel %vm114, %v57, 0.0
    %v131 = vsel %vm115, %v58, 0.0
    %v132 = vsel %vm116, %v59, 0.0
    %v133 = vsel %vm117, %v60, 0.0
    %v134 = vsel %vm118, %v61, 0.0
    %v135 = vsel %vm119, %v62, 0.0
    %v136 = vsel %vm120, %v63, 0.0
    %v137 = vsel %vm121, %v64, 0.0
    %v138 = vsel %vm122, %v65, 0.0
    %v139 = vsel %vm123, %v66, 0.0
    %v140 = vld [vmem:[#allocation2] sm:$0xff]
    %v141 = vld [vmem:[#allocation2 + $0x8] sm:$0xff]
    %142 = vmatprep.subr.mxu0 0.0
    %143 = vmatpush1.msra.mxu0 %v124
    %144 = vmatprep.subr.mxu0 0.0
    %145 = vmatpush1.msra.mxu0 %v125
    %146 = vmatprep.subr.mxu0 0.0
    %147 = vmatpush1.msra.mxu0 %v126
    %148 = vmatprep.subr.mxu0 0.0
    %149 = vmatpush1.msra.mxu0 %v127
    %150 = vmatprep.subr.mxu0 0.0
    %151 = vmatpush1.msra.mxu0 %v128
    %152 = vmatprep.subr.mxu0 0.0
    %153 = vmatpush1.msra.mxu0 %v129
    %154 = vmatprep.subr.mxu0 0.0
    %155 = vmatpush1.msra.mxu0 %v130
    %156 = vmatprep.subr.mxu0 0.0
    %157 = vmatpush1.msra.mxu0 %v131
    %158 = vmatprep.subr.mxu0 0.0
    %159 = vmatpush1.msra.mxu0 %v132
    %160 = vmatprep.subr.mxu0 0.0
    %161 = vmatpush1.msra.mxu0 %v133
    %162 = vmatprep.subr.mxu0 0.0
    %163 = vmatpush1.msra.mxu0 %v134
    %164 = vmatprep.subr.mxu0 0.0
    %165 = vmatpush1.msra.mxu0 %v135
    %166 = vmatprep.subr.mxu0 0.0
    %167 = vmatpush1.msra.mxu0 %v136
    %168 = vmatprep.subr.mxu0 0.0
    %169 = vmatpush1.msra.mxu0 %v137
    %170 = vmatprep.subr.mxu0 0.0
    %171 = vmatpush1.msra.mxu0 %v138
    %172 = vmatprep.subr.mxu0 0.0
    %173 = vmatpush1.msra.mxu0 %v139
    %174 = vmatprep.subr.mxu0 0.0
    %175 = vmatpush1.msra.mxu0 0.0
    %176 = vmatprep.subr.mxu0 0.0
    %177 = vmatpush1.msra.mxu0 0.0
    %178 = vmatprep.subr.mxu0 0.0
    %179 = vmatpush1.msra.mxu0 0.0
    %180 = vmatprep.subr.mxu0 0.0
    %181 = vmatpush1.msra.mxu0 0.0
    %182 = vmatprep.subr.mxu0 0.0
    %183 = vmatpush1.msra.mxu0 0.0
    %184 = vmatprep.subr.mxu0 0.0
    %185 = vmatpush1.msra.mxu0 0.0
    %186 = vmatprep.subr.mxu0 0.0
    %187 = vmatpush1.msra.mxu0 0.0
    %188 = vmatprep.subr.mxu0 0.0
    %189 = vmatpush1.msra.mxu0 0.0
    %190 = vmatprep.subr.mxu0 0.0
    %191 = vmatpush1.msra.mxu0 0.0
    %192 = vmatprep.subr.mxu0 0.0
    %193 = vmatpush1.msra.mxu0 0.0
    %194 = vmatprep.subr.mxu0 0.0
    %195 = vmatpush1.msra.mxu0 0.0
    %196 = vmatprep.subr.mxu0 0.0
    %197 = vmatpush1.msra.mxu0 0.0
    %198 = vmatprep.subr.mxu0 0.0
    %199 = vmatpush1.msra.mxu0 0.0
    %200 = vmatprep.subr.mxu0 0.0
    %201 = vmatpush1.msra.mxu0 0.0
    %202 = vmatprep.subr.mxu0 0.0
    %203 = vmatpush1.msra.mxu0 0.0
    %204 = vmatprep.subr.mxu0 0.0
    %205 = vmatpush1.msra.mxu0 0.0
    %206 = vmatprep.mubr.f32.mxu0 0.0
    %207 = vmatmul.mubr.f32.gmra.mrb[0].mxu0 %v73
    %v208 = vpop.f32.mrb[0].mxu0
    %v209 = vadd.f32 0.0, %v208
    %v210 = vpop.f32.mrb[0].mxu0
    %211 = vmatprep.mubr.f32.mxu0 0.0
    %212 = vmatmul.mubr.f32.gmra.mrb[0].mxu0 %v74
    %v213 = vpop.f32.mrb[0].mxu0
    %v214 = vadd.f32 0.0, %v213
    %v215 = vpop.f32.mrb[0].mxu0
    %216 = vdwg.mxu0
    %v217 = vadd.f32 %v140, %v209
    %v218 = vadd.f32 %v141, %v214
    %219 = vst [vmem:[#allocation2] sm:$0xff] %v217
    %220 = vst [vmem:[#allocation2 + $0x8] sm:$0xff] %v218
    // Predicated region
    $region26: #{tpu_custom_call.1} parent=1 // pred_check
      %p221 = pneg %p43
    $region27: #{tpu_custom_call.1} parent=1 // pred_check_branch
      %223 = sbr.rel (%p221) target = $region29
    $region28: #{tpu_custom_call.1} parent=1 // pred_region
      %v224 = vld [vmem:[#allocation2] sm:$0xff]
      %v225 = vld [vmem:[#allocation2 + $0x8] sm:$0xff]
      %v226 = vld [vmem:[%s2] sm:$0x1]
      %v228 = vlaneseq
      %v229 = vshrl.u32 %v228, 7
      %v230 = vsub.s32 0, %v229
      %v231 = vrot.slane %v226, %v230
      %v233 = vadd.f32 %v224, %v231
      %v234 = vadd.f32 %v225, %v231
      %235 = vst [vmem:[#allocation8] sm:$0xff] %v233
      %236 = vst [vmem:[#allocation8 + $0x8] sm:$0xff] %v234
    $region29: #{tpu_custom_call.1} parent=1 // pred_fallthru
      _
    // Predicated region
    $region30: #{tpu_custom_call.1} parent=1 // pred_check
      _
    $region31: #{tpu_custom_call.1} parent=1 // pred_check_branch
      %238 = sbr.rel (0) target = $region33
    $region32: #{tpu_custom_call.1} parent=1 // pred_region
      %s240 = ssub.s32 256, 256
      %241 = vsyncadd [#allocation5], %s240
      %s242 = sshll.u32 [#allocation8], 4
      %s243 = int_to_ptr.vmem [resolvable:$true] %s242
      %248 = dma.vmem_to_hbm [thread:$0]  %s243, 256, %s3, [#allocation5], 128, 128, 8
    $region33: #{tpu_custom_call.1} parent=1 // pred_fallthru
      _
    // Predicated region
    $region34: #{tpu_custom_call.1} parent=1 // pred_check
      _
    $region35: #{tpu_custom_call.1} parent=1 // pred_check_branch
      %250 = sbr.rel (0) target = $region37
    $region36: #{tpu_custom_call.1} parent=1 // pred_region
      %251 = dma.done [#allocation5], 256
    $region37: #{tpu_custom_call.1} parent=1 // pred_fallthru
      _
    %252 = vsyncpa [#allocation4], 1
    %253 = vsyncpa [#allocation7], 1
    %254 = vsyncpa [#allocation5], 1

</llo_original>
